<compile_context>
chip_gen: v6e
topology: v6e:2x2x1
jax: 0.10.0
libtpu: 0.0.40
codegen_flags: <defaults>
</compile_context>

<pallas_src>
import jax
import jax.numpy as jnp
from jax.experimental import pallas as pl
from jax.experimental.pallas import tpu as pltpu


_LANES = 128


def _round_up(x, m):
    return ((x + m - 1) // m) * m


def _policy_mlp_kernel(x_ref, w1_ref, b1_ref, w2_ref, b2_ref, w3_ref, b3_ref,
                       out_ref):
    # Layer 1: Linear (bf16 operands, f32 MXU accumulation) + bias + ReLU.
    h = jnp.dot(x_ref[...], w1_ref[...], preferred_element_type=jnp.float32)
    h = jnp.maximum(h + b1_ref[...], 0.0)
    # Layer 2: Linear + bias + ReLU.
    h = jnp.dot(h.astype(w2_ref.dtype), w2_ref[...],
                preferred_element_type=jnp.float32)
    h = jnp.maximum(h + b2_ref[...], 0.0)
    # Output head (lane-padded to 128): Linear, no activation.
    o = jnp.dot(h.astype(w3_ref.dtype), w3_ref[...],
                preferred_element_type=jnp.float32)
    out_ref[...] = (o + b3_ref[...]).astype(out_ref.dtype)


def policy_forward(obs, params, *, block_b=512, compute_dtype=jnp.bfloat16):
    """Fused MLP policy forward.  obs: [B, obs_dim] float32 -> [B, action_dim]."""
    (w1, b1), (w2, b2), (w3, b3) = params
    B, obs_dim = obs.shape
    action_dim = w3.shape[1]

    # --- batch tiling: 1-D grid over row tiles of size TB (multiple of 8).
    TB = _round_up(min(block_b, _round_up(B, 8)), 8)
    Bp = _round_up(B, TB)

    # --- lane-dense output: pad action head to a multiple of 128 lanes.
    out_p = _round_up(max(action_dim, _LANES), _LANES)
    w3p = jnp.pad(w3, ((0, 0), (0, out_p - action_dim)))
    b3p = jnp.pad(b3, ((0, 0), (0, out_p - action_dim)))

    # --- bf16 weights/activations, f32 biases (accumulation stays f32).
    x = jnp.pad(obs, ((0, Bp - B), (0, 0))).astype(compute_dtype)
    w1c, w2c, w3c = (w.astype(compute_dtype) for w in (w1, w2, w3p))

    # Weights/biases: constant block index -> fetched once, VMEM-resident.
    const = lambda shape: pl.BlockSpec(shape, lambda i, _s=shape: (0,) * len(_s))

    out = pl.pallas_call(
        _policy_mlp_kernel,
        out_shape=jax.ShapeDtypeStruct((Bp, out_p), jnp.float32),
        grid=(Bp // TB,),
        in_specs=[
            pl.BlockSpec((TB, obs_dim), lambda i: (i, 0)),   # obs row tile
            const(w1c.shape), const(b1.shape),
            const(w2c.shape), const(b2.shape),
            const(w3c.shape), const(b3p.shape),
        ],
        out_specs=pl.BlockSpec((TB, out_p), lambda i: (i, 0)),
        compiler_params=pltpu.CompilerParams(
            dimension_semantics=("parallel",)),              # 2 TCs on v7x
    )(x, w1c, b1, w2c, b2, w3c, b3p)

    return out[:B, :action_dim]


def init_params(key, obs_dim, hidden_dims, action_dim):
    """Deterministic PyTorch-Linear-style init; weights stored [in, out]."""
    dims = [obs_dim] + list(hidden_dims) + [action_dim]
    params = []
    for i in range(len(dims) - 1):
        fan_in, fan_out = dims[i], dims[i + 1]
        key, kw, kb = jax.random.split(key, 3)
        bound = 1.0 / jnp.sqrt(fan_in)
        w = jax.random.uniform(kw, (fan_in, fan_out), jnp.float32, -bound, bound)
        b = jax.random.uniform(kb, (1, fan_out), jnp.float32, -bound, bound)
        params.append((w, b))
    return params


def _ref_forward(obs, params):
    h = obs
    for i, (w, b) in enumerate(params):
        h = jnp.dot(h, w) + b
        if i < len(params) - 1:
            h = jnp.maximum(h, 0.0)
    return h


if __name__ == "__main__":
    B, OBS_DIM, HIDDEN, ACTION_DIM = 8, 16, (32, 32), 4

    key = jax.random.PRNGKey(0)
    key, k_obs = jax.random.split(key)
    obs = jax.random.normal(k_obs, (B, OBS_DIM), jnp.float32)
    params = init_params(key, OBS_DIM, HIDDEN, ACTION_DIM)

    out = jax.block_until_ready(policy_forward(obs, params))
    ref = _ref_forward(obs, params)
    assert out.shape == (B, ACTION_DIM)
    assert jnp.allclose(out, ref, atol=5e-2, rtol=5e-2)

    # Second check: multi-tile batch grid + ragged-batch padding path.
    key, k_obs2 = jax.random.split(key)
    obs2 = jax.random.normal(k_obs2, (300, OBS_DIM), jnp.float32)
    out2 = jax.block_until_ready(policy_forward(obs2, params, block_b=128))
    ref2 = _ref_forward(obs2, params)
    assert out2.shape == (300, ACTION_DIM)
    assert jnp.allclose(out2, ref2, atol=5e-2, rtol=5e-2)

    # TODO(synk): sample()/evaluate_actions() (Categorical/Normal heads) are
    # abstract in the base class; distribution sampling stays in plain JAX.
    print("KERNEL_OK")
</pallas_src>

<mosaic_0001>
module attributes {stable_mosaic.version = 11 : i64} {
  func.func @_policy_mlp_kernel(%arg0: i32, %arg1: memref<8x16xbf16, #tpu.memory_space<vmem>>, %arg2: memref<16x32xbf16, #tpu.memory_space<vmem>>, %arg3: memref<1x32xf32, #tpu.memory_space<vmem>>, %arg4: memref<32x32xbf16, #tpu.memory_space<vmem>>, %arg5: memref<1x32xf32, #tpu.memory_space<vmem>>, %arg6: memref<32x128xbf16, #tpu.memory_space<vmem>>, %arg7: memref<1x128xf32, #tpu.memory_space<vmem>>, %arg8: memref<8x128xf32, #tpu.memory_space<vmem>>) attributes {dimension_semantics = [#tpu.dimension_semantics<parallel>], iteration_bounds = array<i64: 1>, scalar_prefetch = 0 : i64, scratch_operands = 0 : i64, tpu.core_type = #tpu.core_type<tc>, window_params = [{transform_indices = @transform_0, window_bounds = array<i64: 8, 16>}, {pipeline_mode = #tpu.pipeline_mode<synchronous>, transform_indices = @transform_1, window_bounds = array<i64: 16, 32>}, {pipeline_mode = #tpu.pipeline_mode<synchronous>, transform_indices = @transform_2, window_bounds = array<i64: 1, 32>}, {pipeline_mode = #tpu.pipeline_mode<synchronous>, transform_indices = @transform_3, window_bounds = array<i64: 32, 32>}, {pipeline_mode = #tpu.pipeline_mode<synchronous>, transform_indices = @transform_4, window_bounds = array<i64: 1, 32>}, {pipeline_mode = #tpu.pipeline_mode<synchronous>, transform_indices = @transform_5, window_bounds = array<i64: 32, 128>}, {pipeline_mode = #tpu.pipeline_mode<synchronous>, transform_indices = @transform_6, window_bounds = array<i64: 1, 128>}, {transform_indices = @transform_7, window_bounds = array<i64: 8, 128>}]} {
    %c0 = arith.constant 0 : index
    %c0_0 = arith.constant 0 : index
    %0 = vector.load %arg1[%c0, %c0_0] : memref<8x16xbf16, #tpu.memory_space<vmem>>, vector<8x16xbf16>
    %c0_1 = arith.constant 0 : index
    %c0_2 = arith.constant 0 : index
    %1 = vector.load %arg2[%c0_1, %c0_2] : memref<16x32xbf16, #tpu.memory_space<vmem>>, vector<16x32xbf16>
    %cst = arith.constant dense<0.000000e+00> : vector<8x32xf32>
    %2 = tpu.matmul %0, %1, %cst {dimension_numbers = #tpu.dot_dimension_numbers<[1], [0], [0], [1], [0, 0, 1, 1], [], []>} : vector<8x16xbf16>, vector<16x32xbf16>, vector<8x32xf32> -> vector<8x32xf32>
    %c0_3 = arith.constant 0 : index
    %c0_4 = arith.constant 0 : index
    %3 = vector.load %arg3[%c0_3, %c0_4] : memref<1x32xf32, #tpu.memory_space<vmem>>, vector<1x32xf32>
    %4 = vector.broadcast %3 : vector<1x32xf32> to vector<8x32xf32>
    %5 = arith.addf %2, %4 : vector<8x32xf32>
    %cst_5 = arith.constant 0.000000e+00 : f32
    %6 = vector.broadcast %cst_5 : f32 to vector<8x32xf32>
    %7 = arith.maximumf %5, %6 : vector<8x32xf32>
    %8 = arith.truncf %7 : vector<8x32xf32> to vector<8x32xbf16>
    %c0_6 = arith.constant 0 : index
    %c0_7 = arith.constant 0 : index
    %9 = vector.load %arg4[%c0_6, %c0_7] : memref<32x32xbf16, #tpu.memory_space<vmem>>, vector<32x32xbf16>
    %cst_8 = arith.constant dense<0.000000e+00> : vector<8x32xf32>
    %10 = tpu.matmul %8, %9, %cst_8 {dimension_numbers = #tpu.dot_dimension_numbers<[1], [0], [0], [1], [0, 0, 1, 1], [], []>} : vector<8x32xbf16>, vector<32x32xbf16>, vector<8x32xf32> -> vector<8x32xf32>
    %c0_9 = arith.constant 0 : index
    %c0_10 = arith.constant 0 : index
    %11 = vector.load %arg5[%c0_9, %c0_10] : memref<1x32xf32, #tpu.memory_space<vmem>>, vector<1x32xf32>
    %12 = vector.broadcast %11 : vector<1x32xf32> to vector<8x32xf32>
    %13 = arith.addf %10, %12 : vector<8x32xf32>
    %cst_11 = arith.constant 0.000000e+00 : f32
    %14 = vector.broadcast %cst_11 : f32 to vector<8x32xf32>
    %15 = arith.maximumf %13, %14 : vector<8x32xf32>
    %16 = arith.truncf %15 : vector<8x32xf32> to vector<8x32xbf16>
    %c0_12 = arith.constant 0 : index
    %c0_13 = arith.constant 0 : index
    %17 = vector.load %arg6[%c0_12, %c0_13] : memref<32x128xbf16, #tpu.memory_space<vmem>>, vector<32x128xbf16>
    %cst_14 = arith.constant dense<0.000000e+00> : vector<8x128xf32>
    %18 = tpu.matmul %16, %17, %cst_14 {dimension_numbers = #tpu.dot_dimension_numbers<[1], [0], [0], [1], [0, 0, 1, 1], [], []>} : vector<8x32xbf16>, vector<32x128xbf16>, vector<8x128xf32> -> vector<8x128xf32>
    %c0_15 = arith.constant 0 : index
    %c0_16 = arith.constant 0 : index
    %19 = vector.load %arg7[%c0_15, %c0_16] : memref<1x128xf32, #tpu.memory_space<vmem>>, vector<1x128xf32>
    %20 = vector.broadcast %19 : vector<1x128xf32> to vector<8x128xf32>
    %21 = arith.addf %18, %20 : vector<8x128xf32>
    %c0_17 = arith.constant 0 : index
    %c0_18 = arith.constant 0 : index
    %22 = vector.load %arg8[%c0_17, %c0_18] : memref<8x128xf32, #tpu.memory_space<vmem>>, vector<8x128xf32>
    tpu.vector_store %arg8[%c0_17, %c0_18], %21 {strides = array<i32>} : memref<8x128xf32, #tpu.memory_space<vmem>>, vector<8x128xf32>,
    return
  }
  func.func @transform_0(%arg0: i32) -> (i32, i32) {
    %c0_i32 = arith.constant 0 : i32
    %c0_i32_0 = arith.constant 0 : i32
    return %arg0, %c0_i32 : i32, i32
  }
  func.func @transform_1(%arg0: i32) -> (i32, i32) {
    %c0_i32 = arith.constant 0 : i32
    %c0_i32_0 = arith.constant 0 : i32
    %c0_i32_1 = arith.constant 0 : i32
    return %c0_i32, %c0_i32_0 : i32, i32
  }
  func.func @transform_2(%arg0: i32) -> (i32, i32) {
    %c0_i32 = arith.constant 0 : i32
    %c0_i32_0 = arith.constant 0 : i32
    %c0_i32_1 = arith.constant 0 : i32
    return %c0_i32, %c0_i32_0 : i32, i32
  }
  func.func @transform_3(%arg0: i32) -> (i32, i32) {
    %c0_i32 = arith.constant 0 : i32
    %c0_i32_0 = arith.constant 0 : i32
    %c0_i32_1 = arith.constant 0 : i32
    return %c0_i32, %c0_i32_0 : i32, i32
  }
  func.func @transform_4(%arg0: i32) -> (i32, i32) {
    %c0_i32 = arith.constant 0 : i32
    %c0_i32_0 = arith.constant 0 : i32
    %c0_i32_1 = arith.constant 0 : i32
    return %c0_i32, %c0_i32_0 : i32, i32
  }
  func.func @transform_5(%arg0: i32) -> (i32, i32) {
    %c0_i32 = arith.constant 0 : i32
    %c0_i32_0 = arith.constant 0 : i32
    %c0_i32_1 = arith.constant 0 : i32
    return %c0_i32, %c0_i32_0 : i32, i32
  }
  func.func @transform_6(%arg0: i32) -> (i32, i32) {
    %c0_i32 = arith.constant 0 : i32
    %c0_i32_0 = arith.constant 0 : i32
    %c0_i32_1 = arith.constant 0 : i32
    return %c0_i32, %c0_i32_0 : i32, i32
  }
  func.func @transform_7(%arg0: i32) -> (i32, i32) {
    %c0_i32 = arith.constant 0 : i32
    %c0_i32_0 = arith.constant 0 : i32
    return %arg0, %c0_i32 : i32, i32
  }
}

</mosaic_0001>

<llo_original>
// kernel: tpu_custom_call.1
$region0: #{tpu_custom_call.1}
  #allocation0 [shape = 'u32[]', space=smem, size = 0x4, offset = 0x4, fixed_abs, tag = 'smem constant byte address 0x4 - core index']
  #allocation1 [shape = 'u32[144,128]{1,0:T(1,128)}', space=vmem, size = 0x12000, scoped, tag = 'internal scratch']
  %s0 = inlined_call_operand.hbm [shape: bf16[8,16], index: 0, kind: input, shape index: {}]
  %s1 = inlined_call_operand.hbm [shape: bf16[16,32], index: 1, kind: input, shape index: {}]
  %s2 = inlined_call_operand.vmem [shape: f32[1,32], index: 2, kind: input, shape index: {}]
  %s3 = inlined_call_operand.hbm [shape: bf16[32,32], index: 3, kind: input, shape index: {}]
  %s4 = inlined_call_operand.vmem [shape: f32[1,32], index: 4, kind: input, shape index: {}]
  %s5 = inlined_call_operand.hbm [shape: bf16[32,128], index: 5, kind: input, shape index: {}]
  %s6 = inlined_call_operand.vmem [shape: f32[1,128], index: 6, kind: input, shape index: {}]
  %s7 = inlined_call_operand.hbm [shape: f32[8,128], index: 7, kind: output, shape index: {}]
  %s8 = sld [smem:[#allocation0]]
  $region54: #{tpu_custom_call.1} parent=0
    _
  %s10 = ssub.s32 1, %s8
  %s11 = scalar_select 0, %s10, %s8
  $region1: #{tpu_custom_call.1} parent=0
    #allocation2 [shape = 'u8[2048]{0}', space=vmem, size = 0x800, scoped, tag = 'input window, operand 0, single buffered']
    #allocation3 [shape = 's32[1]{0}', space=sflag, size = 0x4, scoped, tag = 'scoped memory for tpu_custom_call.1']
    #allocation4 [shape = 's32[1]{0}', space=sflag, size = 0x4, scoped, tag = 'scoped memory for tpu_custom_call.1']
    #allocation5 [shape = 'u8[4096]{0}', space=vmem, size = 0x1000, scoped, tag = 'input window, operand 1, single buffered']
    #allocation6 [shape = 's32[1]{0}', space=sflag, size = 0x4, scoped, tag = 'scoped memory for tpu_custom_call.1']
    #allocation7 [shape = 'u8[8192]{0}', space=vmem, size = 0x2000, scoped, tag = 'input window, operand 3, single buffered']
    #allocation8 [shape = 'u8[8192]{0}', space=vmem, size = 0x2000, scoped, tag = 'input window, operand 5, single buffered']
    #allocation9 [shape = 's32[1]{0}', space=sflag, size = 0x4, scoped, tag = 'scoped memory for tpu_custom_call.1']
    #allocation10 [shape = 'u8[4096]{0}', space=vmem, size = 0x1000, scoped, tag = 'output window, operand 0, single buffered']
    %12 = vsyncpa [#allocation3], 0
    %13 = vsyncpa [#allocation6], 0
    %14 = vsyncpa [#allocation9], 0
    %15 = vsyncpa [#allocation4], 0
    // Predicated region
    $region2: #{tpu_custom_call.1} parent=1 // pred_check
      _
    $region3: #{tpu_custom_call.1} parent=1 // pred_check_branch
      %17 = sbr.rel (0) target = $region5
    $region4: #{tpu_custom_call.1} parent=1 // pred_region
      %s19 = ssub.s32 64, 64
      %20 = vsyncadd [#allocation3], %s19
      %s22 = sshll.u32 [#allocation2], 4
      %s23 = int_to_ptr.vmem [resolvable:$true] %s22
      %25 = dma.hbm_to_vmem [thread:$0]  %s0, 64, %s23, [#allocation3]
    $region5: #{tpu_custom_call.1} parent=1 // pred_fallthru
      _
    // Predicated region
    $region6: #{tpu_custom_call.1} parent=1 // pred_check
      _
    $region7: #{tpu_custom_call.1} parent=1 // pred_check_branch
      %27 = sbr.rel (0) target = $region9
    $region8: #{tpu_custom_call.1} parent=1 // pred_region
      %s29 = ssub.s32 128, 128
      %30 = vsyncadd [#allocation6], %s29
      %s31 = sshll.u32 [#allocation5], 4
      %s32 = int_to_ptr.vmem [resolvable:$true] %s31
      %37 = dma.hbm_to_vmem [thread:$0]  %s1, 128, %s32, [#allocation6], 64, 64, 4
    $region9: #{tpu_custom_call.1} parent=1 // pred_fallthru
      _
    // Predicated region
    $region10: #{tpu_custom_call.1} parent=1 // pred_check
      _
    $region11: #{tpu_custom_call.1} parent=1 // pred_check_branch
      %39 = sbr.rel (0) target = $region13
    $region12: #{tpu_custom_call.1} parent=1 // pred_region
      _
    $region13: #{tpu_custom_call.1} parent=1 // pred_fallthru
      _
    // Predicated region
    $region14: #{tpu_custom_call.1} parent=1 // pred_check
      _
    $region15: #{tpu_custom_call.1} parent=1 // pred_check_branch
      %41 = sbr.rel (0) target = $region17
    $region16: #{tpu_custom_call.1} parent=1 // pred_region
      %s43 = ssub.s32 256, 256
      %44 = vsyncadd [#allocation6], %s43
      %s45 = sshll.u32 [#allocation7], 4
      %s46 = int_to_ptr.vmem [resolvable:$true] %s45
      %51 = dma.hbm_to_vmem [thread:$0]  %s3, 256, %s46, [#allocation6], 64, 64, 4
    $region17: #{tpu_custom_call.1} parent=1 // pred_fallthru
      _
    // Predicated region
    $region18: #{tpu_custom_call.1} parent=1 // pred_check
      _
    $region19: #{tpu_custom_call.1} parent=1 // pred_check_branch
      %53 = sbr.rel (0) target = $region21
    $region20: #{tpu_custom_call.1} parent=1 // pred_region
      _
    $region21: #{tpu_custom_call.1} parent=1 // pred_fallthru
      _
    // Predicated region
    $region22: #{tpu_custom_call.1} parent=1 // pred_check
      _
    $region23: #{tpu_custom_call.1} parent=1 // pred_check_branch
      %55 = sbr.rel (0) target = $region25
    $region24: #{tpu_custom_call.1} parent=1 // pred_region
      %s57 = ssub.s32 256, 256
      %58 = vsyncadd [#allocation9], %s57
      %s59 = sshll.u32 [#allocation8], 4
      %s60 = int_to_ptr.vmem [resolvable:$true] %s59
      %65 = dma.hbm_to_vmem [thread:$0]  %s5, 256, %s60, [#allocation9], 64, 64, 4
    $region25: #{tpu_custom_call.1} parent=1 // pred_fallthru
      _
    // Predicated region
    $region26: #{tpu_custom_call.1} parent=1 // pred_check
      _
    $region27: #{tpu_custom_call.1} parent=1 // pred_check_branch
      %67 = sbr.rel (0) target = $region29
    $region28: #{tpu_custom_call.1} parent=1 // pred_region
      _
    $region29: #{tpu_custom_call.1} parent=1 // pred_fallthru
      _
    // Predicated region
    $region30: #{tpu_custom_call.1} parent=1 // pred_check
      _
    $region31: #{tpu_custom_call.1} parent=1 // pred_check_branch
      %69 = sbr.rel (0) target = $region33
    $region32: #{tpu_custom_call.1} parent=1 // pred_region
      %70 = dma.done [#allocation3], 64
    $region33: #{tpu_custom_call.1} parent=1 // pred_fallthru
      _
    // Predicated region
    $region34: #{tpu_custom_call.1} parent=1 // pred_check
      _
    $region35: #{tpu_custom_call.1} parent=1 // pred_check_branch
      %72 = sbr.rel (0) target = $region37
    $region36: #{tpu_custom_call.1} parent=1 // pred_region
      %73 = dma.done [#allocation6], 128
    $region37: #{tpu_custom_call.1} parent=1 // pred_fallthru
      _
    // Predicated region
    $region38: #{tpu_custom_call.1} parent=1 // pred_check
      _
    $region39: #{tpu_custom_call.1} parent=1 // pred_check_branch
      %75 = sbr.rel (0) target = $region41
    $region40: #{tpu_custom_call.1} parent=1 // pred_region
      %76 = dma.done [#allocation6], 256
    $region41: #{tpu_custom_call.1} parent=1 // pred_fallthru
      _
    // Predicated region
    $region42: #{tpu_custom_call.1} parent=1 // pred_check
      _
    $region43: #{tpu_custom_call.1} parent=1 // pred_check_branch
      %78 = sbr.rel (0) target = $region45
    $region44: #{tpu_custom_call.1} parent=1 // pred_region
      %79 = dma.done [#allocation9], 256
    $region45: #{tpu_custom_call.1} parent=1 // pred_fallthru
      _
    %v81 = vld [vmem:[#allocation2] sm:$0xf]
    %v82 = vld [vmem:[#allocation5] sm:$0xf]
    %v83 = vld [vmem:[#allocation5 + $0x4] sm:$0xf]
    %v84 = vld [vmem:[%s2] sm:$0x1]
    %v86 = vlaneseq
    %v87 = vshrl.u32 %v86, 7
    %v88 = vsub.s32 0, %v87
    %v89 = vrot.slane %v84, %v88
    %v93 = vunpack.c.l.b16 %v82
    %v94 = vunpack.c.l.b16 %v83
    %v95 = vpack.c.b16 %v94, %v93
    %vm97 = vcmask 130048
    %v99 = vsel %vm97, %v81, 0
    %101 = vmatprep.subr.bf16.mxu0 0
    %102 = vmatpush1.bf16.msra.mxu0 0
    %103 = vmatprep.subr.bf16.mxu0 0
    %104 = vmatpush1.bf16.msra.mxu0 0
    %105 = vmatprep.subr.bf16.mxu0 0
    %106 = vmatpush1.bf16.msra.mxu0 0
    %107 = vmatprep.subr.bf16.mxu0 0
    %108 = vmatpush1.bf16.msra.mxu0 0
    %109 = vmatprep.subr.bf16.mxu0 0
    %110 = vmatpush1.bf16.msra.mxu0 0
    %111 = vmatprep.subr.bf16.mxu0 0
    %112 = vmatpush1.bf16.msra.mxu0 0
    %113 = vmatprep.subr.bf16.mxu0 0
    %114 = vmatpush1.bf16.msra.mxu0 0
    %115 = vmatprep.subr.bf16.mxu0 0
    %116 = vmatpush1.bf16.msra.mxu0 %v95
    %117 = vmatprep.subr.bf16.mxu0 0
    %118 = vmatpush2.bf16.msra.mxu0 0
    %119 = vmatprep.subr.bf16.mxu0 0
    %120 = vmatpush2.bf16.msra.mxu0 0
    %121 = vmatprep.subr.bf16.mxu0 0
    %122 = vmatpush2.bf16.msra.mxu0 0
    %123 = vmatprep.subr.bf16.mxu0 0
    %124 = vmatpush2.bf16.msra.mxu0 0
    %125 = vmatprep.subr.bf16.mxu0 0
    %126 = vmatpush2.bf16.msra.mxu0 0
    %127 = vmatprep.subr.bf16.mxu0 0
    %128 = vmatpush2.bf16.msra.mxu0 0
    %129 = vmatprep.subr.bf16.mxu0 0
    %130 = vmatpush2.bf16.msra.mxu0 0
    %131 = vmatprep.subr.bf16.mxu0 0
    %132 = vmatpush2.bf16.msra.mxu0 0
    %133 = vmatprep.mubr.bf16.mxu0 0
    %134 = vmatmul.mubr.bf16.gmra.mxu0 %v99
    %v135 = vpop.f32.mrf.mxu0
    %v136 = vadd.f32 %v89, %v135
    %v137 = vpop.f32.mrf.mxu0
    %v138 = vpop.f32.mrf.mxu0
    %v139 = vpop.f32.mrf.mxu0
    %140 = vdwg.mxu0
    %v141 = vmax.f32 %v136, 0.0
    %v142 = vpack.c.bf16 %v141, %v141
    %v143 = vld [vmem:[#allocation7] sm:$0xf]
    %v144 = vld [vmem:[#allocation7 + $0x4] sm:$0xf]
    %v145 = vld [vmem:[#allocation7 + $0x8] sm:$0xf]
    %v146 = vld [vmem:[#allocation7 + $0xc] sm:$0xf]
    %v147 = vld [vmem:[%s4] sm:$0x1]
    %v149 = vlaneseq
    %v150 = vshrl.u32 %v149, 7
    %v151 = vsub.s32 0, %v150
    %v152 = vrot.slane %v147, %v151
    %v158 = vunpack.c.l.b16 %v143
    %v159 = vunpack.c.l.b16 %v144
    %v160 = vunpack.c.l.b16 %v145
    %v161 = vunpack.c.l.b16 %v146
    %v162 = vpack.c.b16 %v159, %v158
    %v163 = vpack.c.b16 %v161, %v160
    %vm166 = vcmask 261120
    %v168 = vsel %vm166, %v142, 0
    %170 = vmatprep.subr.bf16.mxu0 0
    %171 = vmatpush1.bf16.msra.mxu0 0
    %172 = vmatprep.subr.bf16.mxu0 0
    %173 = vmatpush1.bf16.msra.mxu0 0
    %174 = vmatprep.subr.bf16.mxu0 0
    %175 = vmatpush1.bf16.msra.mxu0 0
    %176 = vmatprep.subr.bf16.mxu0 0
    %177 = vmatpush1.bf16.msra.mxu0 0
    %178 = vmatprep.subr.bf16.mxu0 0
    %179 = vmatpush1.bf16.msra.mxu0 0
    %180 = vmatprep.subr.bf16.mxu0 0
    %181 = vmatpush1.bf16.msra.mxu0 0
    %182 = vmatprep.subr.bf16.mxu0 0
    %183 = vmatpush1.bf16.msra.mxu0 %v163
    %184 = vmatprep.subr.bf16.mxu0 0
    %185 = vmatpush1.bf16.msra.mxu0 %v162
    %186 = vmatprep.subr.bf16.mxu0 0
    %187 = vmatpush2.bf16.msra.mxu0 0
    %188 = vmatprep.subr.bf16.mxu0 0
    %189 = vmatpush2.bf16.msra.mxu0 0
    %190 = vmatprep.subr.bf16.mxu0 0
    %191 = vmatpush2.bf16.msra.mxu0 0
    %192 = vmatprep.subr.bf16.mxu0 0
    %193 = vmatpush2.bf16.msra.mxu0 0
    %194 = vmatprep.subr.bf16.mxu0 0
    %195 = vmatpush2.bf16.msra.mxu0 0
    %196 = vmatprep.subr.bf16.mxu0 0
    %197 = vmatpush2.bf16.msra.mxu0 0
    %198 = vmatprep.subr.bf16.mxu0 0
    %199 = vmatpush2.bf16.msra.mxu0 0
    %200 = vmatprep.subr.bf16.mxu0 0
    %201 = vmatpush2.bf16.msra.mxu0 0
    %202 = vmatprep.mubr.bf16.mxu0 0
    %203 = vmatmul.mubr.bf16.gmra.mxu0 %v168
    %v204 = vpop.f32.mrf.mxu0
    %v205 = vadd.f32 %v152, %v204
    %v206 = vpop.f32.mrf.mxu0
    %v207 = vpop.f32.mrf.mxu0
    %v208 = vpop.f32.mrf.mxu0
    %209 = vdwg.mxu0
    %v210 = vmax.f32 %v205, 0.0
    %v211 = vpack.c.bf16 %v210, %v210
    %v212 = vld [vmem:[#allocation8] sm:$0xf]
    %v213 = vld [vmem:[#allocation8 + $0x4] sm:$0xf]
    %v214 = vld [vmem:[#allocation8 + $0x8] sm:$0xf]
    %v215 = vld [vmem:[#allocation8 + $0xc] sm:$0xf]
    %v216 = vld [vmem:[%s6] sm:$0x1]
    %v218 = vlaneseq
    %v219 = vshrl.u32 %v218, 7
    %v220 = vsub.s32 0, %v219
    %v221 = vrot.slane %v216, %v220
    %v227 = vunpack.c.l.b16 %v212
    %v228 = vunpack.c.l.b16 %v213
    %v229 = vunpack.c.l.b16 %v214
    %v230 = vunpack.c.l.b16 %v215
    %v231 = vpack.c.b16 %v228, %v227
    %v232 = vpack.c.b16 %v230, %v229
    %v236 = vsel %vm166, %v211, 0
    %238 = vmatprep.subr.bf16.mxu0 0
    %239 = vmatpush1.bf16.msra.mxu0 0
    %240 = vmatprep.subr.bf16.mxu0 0
    %241 = vmatpush1.bf16.msra.mxu0 0
    %242 = vmatprep.subr.bf16.mxu0 0
    %243 = vmatpush1.bf16.msra.mxu0 0
    %244 = vmatprep.subr.bf16.mxu0 0
    %245 = vmatpush1.bf16.msra.mxu0 0
    %246 = vmatprep.subr.bf16.mxu0 0
    %247 = vmatpush1.bf16.msra.mxu0 0
    %248 = vmatprep.subr.bf16.mxu0 0
    %249 = vmatpush1.bf16.msra.mxu0 0
    %250 = vmatprep.subr.bf16.mxu0 0
    %251 = vmatpush1.bf16.msra.mxu0 %v232
    %252 = vmatprep.subr.bf16.mxu0 0
    %253 = vmatpush1.bf16.msra.mxu0 %v231
    %254 = vmatprep.subr.bf16.mxu0 0
    %255 = vmatpush2.bf16.msra.mxu0 0
    %256 = vmatprep.subr.bf16.mxu0 0
    %257 = vmatpush2.bf16.msra.mxu0 0
    %258 = vmatprep.subr.bf16.mxu0 0
    %259 = vmatpush2.bf16.msra.mxu0 0
    %260 = vmatprep.subr.bf16.mxu0 0
    %261 = vmatpush2.bf16.msra.mxu0 0
    %262 = vmatprep.subr.bf16.mxu0 0
    %263 = vmatpush2.bf16.msra.mxu0 0
    %264 = vmatprep.subr.bf16.mxu0 0
    %265 = vmatpush2.bf16.msra.mxu0 0
    %266 = vmatprep.subr.bf16.mxu0 0
    %267 = vmatpush2.bf16.msra.mxu0 0
    %268 = vmatprep.subr.bf16.mxu0 0
    %269 = vmatpush2.bf16.msra.mxu0 0
    %270 = vmatprep.mubr.bf16.mxu0 0
    %271 = vmatmul.mubr.bf16.gmra.mxu0 %v236
    %v272 = vpop.f32.mrf.mxu0
    %v273 = vadd.f32 %v221, %v272
    %v274 = vpop.f32.mrf.mxu0
    %v275 = vpop.f32.mrf.mxu0
    %v276 = vpop.f32.mrf.mxu0
    %277 = vdwg.mxu0
    %278 = vst [vmem:[#allocation10] sm:$0xff] %v273
    // Predicated region
    $region46: #{tpu_custom_call.1} parent=1 // pred_check
      _
    $region47: #{tpu_custom_call.1} parent=1 // pred_check_branch
      %280 = sbr.rel (0) target = $region49
    $region48: #{tpu_custom_call.1} parent=1 // pred_region
      %s282 = ssub.s32 128, 128
      %283 = vsyncadd [#allocation4], %s282
      %s285 = sshll.u32 [#allocation10], 4
      %s286 = int_to_ptr.vmem [resolvable:$true] %s285
      %288 = dma.vmem_to_hbm [thread:$0]  %s286, 128, %s7, [#allocation4]
    $region49: #{tpu_custom_call.1} parent=1 // pred_fallthru
      _
    // Predicated region
    $region50: #{tpu_custom_call.1} parent=1 // pred_check
      _
    $region51: #{tpu_custom_call.1} parent=1 // pred_check_branch
      %290 = sbr.rel (0) target = $region53
    $region52: #{tpu_custom_call.1} parent=1 // pred_region
      %291 = dma.done [#allocation4], 128
    $region53: #{tpu_custom_call.1} parent=1 // pred_fallthru
      _
    %292 = vsyncpa [#allocation3], 1
    %293 = vsyncpa [#allocation6], 1
    %294 = vsyncpa [#allocation9], 1
    %295 = vsyncpa [#allocation4], 1

</llo_original>
